<compile_context>
chip_gen: v6e
topology: v6e:2x2x1
jax: 0.10.0
libtpu: 0.0.40
codegen_flags: <defaults>
</compile_context>

<pallas_src>
import numpy as np
import jax
import jax.numpy as jnp
from jax.experimental import pallas as pl
from jax.experimental.pallas import tpu as pltpu

LANE = 128  # hidden feature dims are zero-padded to the 128-lane vreg width


# ------------------------- deterministic parameter init -------------------------

def fanin_init_jax(key, shape, eps=None):
    """Mirror of fanin_init: uniform(-v, v) with v = eps or 1/sqrt(shape[0]).

    PyTorch weight shape is (out_features, in_features), so shape[0] is
    out_features — replicated faithfully, then transposed for the kernel.
    """
    fanin = shape[0]
    v = eps if eps is not None else 1.0 / np.sqrt(fanin)
    return jax.random.uniform(key, shape, minval=-v, maxval=v, dtype=jnp.float32)


def make_actor_params(key, node_counts):
    """Returns list of (W_T, b) with W_T shape (in, out), b shape (1, out), f32."""
    params = []
    n_layers = len(node_counts) - 1
    keys = jax.random.split(key, 2 * n_layers)
    for idx in range(n_layers):
        in_f, out_f = node_counts[idx], node_counts[idx + 1]
        eps = 0.003 if idx == n_layers - 1 else None
        # PyTorch weight shape (out, in) initialized by fanin_init, then transposed.
        w = fanin_init_jax(keys[2 * idx], (out_f, in_f), eps=eps)
        # nn.Linear default bias init: uniform(-1/sqrt(in), 1/sqrt(in))
        bb = 1.0 / np.sqrt(in_f)
        b = jax.random.uniform(keys[2 * idx + 1], (1, out_f),
                               minval=-bb, maxval=bb, dtype=jnp.float32)
        params.append((jnp.transpose(w), b))
    return params


def pack_actor_params(params):
    """Pack per-layer (W_T, b) into lane-dense, 128-padded slabs.

    Returns:
      w_slab: (n_layers, 128, 128) bf16  -- zero-padded W_T per layer
      b_slab: (n_layers, 1, 128)   f32   -- zero-padded bias row per layer
    Zero padding is exact: padded output columns stay 0 through ReLU and the
    padded input rows of the next layer's weights are also 0.
    """
    n_layers = len(params)
    w_slab = jnp.zeros((n_layers, LANE, LANE), jnp.bfloat16)
    b_slab = jnp.zeros((n_layers, 1, LANE), jnp.float32)
    for l, (w, b) in enumerate(params):
        in_f, out_f = w.shape
        w_slab = w_slab.at[l, :in_f, :out_f].set(w.astype(jnp.bfloat16))
        b_slab = b_slab.at[l, :, :out_f].set(b)
    return w_slab, b_slab


# ------------------------------- Pallas kernel ----------------------------------

def _make_actor_kernel(n_layers, obs, out_width, action_bound):
    """Fused MLP forward on one [TB, obs] batch tile; params are VMEM-resident.

    Layers are statically unrolled. Matmuls run bf16 x bf16 -> f32 on the MXU;
    bias add / ReLU / tanh / bound scale stay in f32 on the VPU/EUP.
    """

    def kernel(x_ref, w_ref, b_ref, o_ref):
        hb = x_ref[...]                                   # (TB, obs) bf16
        h32 = None
        for layer in range(n_layers):                     # static unroll
            w = w_ref[layer]                              # (128, 128) bf16
            if layer == 0:
                w = w[:obs, :]                            # only real input rows
            b = b_ref[layer]                              # (1, 128) f32
            z = jnp.dot(hb, w, preferred_element_type=jnp.float32) + b
            if layer < n_layers - 1:
                h32 = jnp.maximum(z, 0.0)                 # ReLU in f32 (v5e-safe)
                hb = h32.astype(jnp.bfloat16)             # next matmul operand
            else:
                h32 = jnp.tanh(z) * action_bound          # tanh * Action_bound in f32
        # Only the first `out_width` lanes are written back (padded lanes are 0).
        o_ref[...] = h32[:, :out_width].astype(o_ref.dtype)

    return kernel


def actor_forward(x, params, action_bound, *, tb=None):
    """x: [batch, obs] f32.  params: list of (W_T [in,out] f32, b [1,out] f32).

    Returns [batch, action_size] f32.
    Tile policy (per perf review): small batches run as a single grid step
    (grid=(1,)) on one TensorCore; large batches use 512-row tiles with the
    batch axis marked "parallel" (sharded across TCs on v7x).
    """
    batch, obs = x.shape
    action_size = params[-1][0].shape[1]
    n_layers = len(params)

    # Output width: action_size rounded up to 8 (>= 4), still "full extent" for
    # the BlockSpec last dim; padded action lanes are exactly zero.
    out_width = min(LANE, int(pl.cdiv(action_size, 8)) * 8)

    if tb is None:
        if batch <= 1024:
            tb = int(pl.cdiv(batch, 8)) * 8      # whole batch in one step, grid=(1,)
        else:
            tb = 512                             # amortize per-step overhead / MXU fill
    assert tb % 8 == 0, "batch tile must be a multiple of 8 sublanes"

    batch_pad = int(pl.cdiv(batch, tb)) * tb
    w_slab, b_slab = pack_actor_params(params)

    # Input stays un-padded on the feature axis; operands are bf16 in the kernel
    # anyway, so feeding bf16 is numerically identical and 4x cheaper than f32.
    xb = x.astype(jnp.bfloat16)
    if batch_pad != batch:
        xb = jnp.zeros((batch_pad, obs), jnp.bfloat16).at[:batch, :].set(xb)

    grid = (batch_pad // tb,)
    kernel = _make_actor_kernel(n_layers, obs, out_width, action_bound)

    out_pad = pl.pallas_call(
        kernel,
        out_shape=jax.ShapeDtypeStruct((batch_pad, out_width), jnp.float32),
        grid_spec=pltpu.PrefetchScalarGridSpec(
            num_scalar_prefetch=0,
            grid=grid,
            in_specs=[
                # activation tile: one block per grid step, un-padded feature dim
                pl.BlockSpec((tb, obs), lambda i: (i, 0)),
                # packed weight slab: full-extent, constant block -> stays in VMEM
                pl.BlockSpec((n_layers, LANE, LANE), lambda i: (0, 0, 0)),
                # packed bias slab: full-extent, constant block -> stays in VMEM
                pl.BlockSpec((n_layers, 1, LANE), lambda i: (0, 0, 0)),
            ],
            out_specs=pl.BlockSpec((tb, out_width), lambda i: (i, 0)),
        ),
        compiler_params=pltpu.CompilerParams(
            # harmless at grid=(1,); shards large-batch grids across TCs on v7x
            dimension_semantics=("parallel",),
        ),
    )(xb, w_slab, b_slab)

    return out_pad[:batch, :action_size]


# ----------------------------------- reference ----------------------------------

def actor_forward_ref(x, params, action_bound):
    """Pure-JAX reference with the same bf16 operand rounding, f32 accumulation."""
    h = x
    for i, (w, b) in enumerate(params):
        hb = h.astype(jnp.bfloat16).astype(jnp.float32)
        wb = w.astype(jnp.bfloat16).astype(jnp.float32)
        z = hb @ wb + b
        h = jnp.maximum(z, 0.0) if i < len(params) - 1 else jnp.tanh(z) * action_bound
    return h


# ------------------------------------ main ---------------------------------------

if __name__ == "__main__":
    observation_size = 16
    hidden_layers = [32, 32]
    action_size = 4
    action_bound = 2.0
    batch = 256        # small batch -> single grid step (grid=(1,)), single TC

    node_counts = [observation_size, *hidden_layers, action_size]

    key = jax.random.PRNGKey(0)
    key_params, key_x = jax.random.split(key)
    params = make_actor_params(key_params, node_counts)
    x = jax.random.normal(key_x, (batch, observation_size), dtype=jnp.float32)

    out = actor_forward(x, params, action_bound)
    out = jax.block_until_ready(out)

    ref = actor_forward_ref(x, params, action_bound)
    np.testing.assert_allclose(np.asarray(out), np.asarray(ref), rtol=1e-4, atol=1e-4)

    # TODO(synk): OUNoise.sample / select_action exploration noise, optimizer update
    # and soft_update are stateful host-side training utilities, not part of the
    # forward hot path — left out of the kernel.
    print("KERNEL_OK")
</pallas_src>

<mosaic_0001>
module attributes {stable_mosaic.version = 11 : i64} {
  func.func @kernel(%arg0: i32, %arg1: memref<256x16xbf16, #tpu.memory_space<vmem>>, %arg2: memref<3x128x128xbf16, #tpu.memory_space<vmem>>, %arg3: memref<3x1x128xf32, #tpu.memory_space<vmem>>, %arg4: memref<256x8xf32, #tpu.memory_space<vmem>>) attributes {dimension_semantics = [#tpu.dimension_semantics<parallel>], iteration_bounds = array<i64: 1>, scalar_prefetch = 0 : i64, scratch_operands = 0 : i64, tpu.core_type = #tpu.core_type<tc>, window_params = [{transform_indices = @transform_0, window_bounds = array<i64: 256, 16>}, {pipeline_mode = #tpu.pipeline_mode<synchronous>, transform_indices = @transform_1, window_bounds = array<i64: 3, 128, 128>}, {pipeline_mode = #tpu.pipeline_mode<synchronous>, transform_indices = @transform_2, window_bounds = array<i64: 3, 1, 128>}, {transform_indices = @transform_3, window_bounds = array<i64: 256, 8>}]} {
    %c0 = arith.constant 0 : index
    %c0_0 = arith.constant 0 : index
    %0 = vector.load %arg1[%c0, %c0_0] : memref<256x16xbf16, #tpu.memory_space<vmem>>, vector<256x16xbf16>
    %c0_1 = arith.constant 0 : index
    %c0_2 = arith.constant 0 : index
    %c0_3 = arith.constant 0 : index
    %1 = vector.load %arg2[%c0_1, %c0_2, %c0_3] : memref<3x128x128xbf16, #tpu.memory_space<vmem>>, vector<1x128x128xbf16>
    %2 = vector.shape_cast %1 : vector<1x128x128xbf16> to vector<128x128xbf16>
    %3 = vector.extract_strided_slice %2 {offsets = [0, 0], sizes = [16, 128], strides = [1, 1]} : vector<128x128xbf16> to vector<16x128xbf16>
    %c0_4 = arith.constant 0 : index
    %c0_5 = arith.constant 0 : index
    %c0_6 = arith.constant 0 : index
    %4 = vector.load %arg3[%c0_4, %c0_5, %c0_6] : memref<3x1x128xf32, #tpu.memory_space<vmem>>, vector<1x1x128xf32>
    %5 = vector.shape_cast %4 : vector<1x1x128xf32> to vector<1x128xf32>
    %cst = arith.constant dense<0.000000e+00> : vector<256x128xf32>
    %6 = tpu.matmul %0, %3, %cst {dimension_numbers = #tpu.dot_dimension_numbers<[1], [0], [0], [1], [0, 0, 1, 1], [], []>} : vector<256x16xbf16>, vector<16x128xbf16>, vector<256x128xf32> -> vector<256x128xf32>
    %7 = vector.broadcast %5 : vector<1x128xf32> to vector<256x128xf32>
    %8 = arith.addf %6, %7 : vector<256x128xf32>
    %cst_7 = arith.constant 0.000000e+00 : f32
    %9 = vector.broadcast %cst_7 : f32 to vector<256x128xf32>
    %10 = arith.maximumf %8, %9 : vector<256x128xf32>
    %11 = arith.truncf %10 : vector<256x128xf32> to vector<256x128xbf16>
    %c1 = arith.constant 1 : index
    %c0_8 = arith.constant 0 : index
    %c0_9 = arith.constant 0 : index
    %12 = vector.load %arg2[%c1, %c0_8, %c0_9] : memref<3x128x128xbf16, #tpu.memory_space<vmem>>, vector<1x128x128xbf16>
    %13 = vector.shape_cast %12 : vector<1x128x128xbf16> to vector<128x128xbf16>
    %c1_10 = arith.constant 1 : index
    %c0_11 = arith.constant 0 : index
    %c0_12 = arith.constant 0 : index
    %14 = vector.load %arg3[%c1_10, %c0_11, %c0_12] : memref<3x1x128xf32, #tpu.memory_space<vmem>>, vector<1x1x128xf32>
    %15 = vector.shape_cast %14 : vector<1x1x128xf32> to vector<1x128xf32>
    %cst_13 = arith.constant dense<0.000000e+00> : vector<256x128xf32>
    %16 = tpu.matmul %11, %13, %cst_13 {dimension_numbers = #tpu.dot_dimension_numbers<[1], [0], [0], [1], [0, 0, 1, 1], [], []>} : vector<256x128xbf16>, vector<128x128xbf16>, vector<256x128xf32> -> vector<256x128xf32>
    %17 = vector.broadcast %15 : vector<1x128xf32> to vector<256x128xf32>
    %18 = arith.addf %16, %17 : vector<256x128xf32>
    %cst_14 = arith.constant 0.000000e+00 : f32
    %19 = vector.broadcast %cst_14 : f32 to vector<256x128xf32>
    %20 = arith.maximumf %18, %19 : vector<256x128xf32>
    %21 = arith.truncf %20 : vector<256x128xf32> to vector<256x128xbf16>
    %c2 = arith.constant 2 : index
    %c0_15 = arith.constant 0 : index
    %c0_16 = arith.constant 0 : index
    %22 = vector.load %arg2[%c2, %c0_15, %c0_16] : memref<3x128x128xbf16, #tpu.memory_space<vmem>>, vector<1x128x128xbf16>
    %23 = vector.shape_cast %22 : vector<1x128x128xbf16> to vector<128x128xbf16>
    %c2_17 = arith.constant 2 : index
    %c0_18 = arith.constant 0 : index
    %c0_19 = arith.constant 0 : index
    %24 = vector.load %arg3[%c2_17, %c0_18, %c0_19] : memref<3x1x128xf32, #tpu.memory_space<vmem>>, vector<1x1x128xf32>
    %25 = vector.shape_cast %24 : vector<1x1x128xf32> to vector<1x128xf32>
    %cst_20 = arith.constant dense<0.000000e+00> : vector<256x128xf32>
    %26 = tpu.matmul %21, %23, %cst_20 {dimension_numbers = #tpu.dot_dimension_numbers<[1], [0], [0], [1], [0, 0, 1, 1], [], []>} : vector<256x128xbf16>, vector<128x128xbf16>, vector<256x128xf32> -> vector<256x128xf32>
    %27 = vector.broadcast %25 : vector<1x128xf32> to vector<256x128xf32>
    %28 = arith.addf %26, %27 : vector<256x128xf32>
    %29 = math.tanh %28 : vector<256x128xf32>
    %cst_21 = arith.constant 2.000000e+00 : f32
    %30 = vector.broadcast %cst_21 : f32 to vector<256x128xf32>
    %31 = arith.mulf %29, %30 : vector<256x128xf32>
    %32 = vector.extract_strided_slice %31 {offsets = [0, 0], sizes = [256, 8], strides = [1, 1]} : vector<256x128xf32> to vector<256x8xf32>
    %c0_22 = arith.constant 0 : index
    %c0_23 = arith.constant 0 : index
    %33 = vector.load %arg4[%c0_22, %c0_23] : memref<256x8xf32, #tpu.memory_space<vmem>>, vector<256x8xf32>
    tpu.vector_store %arg4[%c0_22, %c0_23], %32 {strides = array<i32>} : memref<256x8xf32, #tpu.memory_space<vmem>>, vector<256x8xf32>,
    return
  }
  func.func @transform_0(%arg0: i32) -> (i32, i32) {
    %c0_i32 = arith.constant 0 : i32
    %c0_i32_0 = arith.constant 0 : i32
    return %arg0, %c0_i32 : i32, i32
  }
  func.func @transform_1(%arg0: i32) -> (i32, i32, i32) {
    %c0_i32 = arith.constant 0 : i32
    %c0_i32_0 = arith.constant 0 : i32
    %c0_i32_1 = arith.constant 0 : i32
    %c0_i32_2 = arith.constant 0 : i32
    return %c0_i32, %c0_i32_0, %c0_i32_1 : i32, i32, i32
  }
  func.func @transform_2(%arg0: i32) -> (i32, i32, i32) {
    %c0_i32 = arith.constant 0 : i32
    %c0_i32_0 = arith.constant 0 : i32
    %c0_i32_1 = arith.constant 0 : i32
    %c0_i32_2 = arith.constant 0 : i32
    return %c0_i32, %c0_i32_0, %c0_i32_1 : i32, i32, i32
  }
  func.func @transform_3(%arg0: i32) -> (i32, i32) {
    %c0_i32 = arith.constant 0 : i32
    %c0_i32_0 = arith.constant 0 : i32
    return %arg0, %c0_i32 : i32, i32
  }
}

</mosaic_0001>

<llo_original>
// kernel: tpu_custom_call.1
$region0: #{tpu_custom_call.1}
  #allocation0 [shape = 'u32[]', space=smem, size = 0x4, offset = 0x4, fixed_abs, tag = 'smem constant byte address 0x4 - core index']
  #allocation1 [shape = 'u32[144,128]{1,0:T(1,128)}', space=vmem, size = 0x12000, scoped, tag = 'internal scratch']
  %s0 = inlined_call_operand.vmem [shape: bf16[256,16], index: 0, kind: input, shape index: {}]
  %s1 = inlined_call_operand.hbm [shape: bf16[3,128,128], index: 1, kind: input, shape index: {}]
  %s2 = inlined_call_operand.vmem [shape: f32[3,1,128], index: 2, kind: input, shape index: {}]
  %s3 = inlined_call_operand.vmem [shape: f32[256,8], index: 3, kind: output, shape index: {}]
  %s4 = sld [smem:[#allocation0]]
  $region26: #{tpu_custom_call.1} parent=0
    _
  %s6 = ssub.s32 1, %s4
  %s7 = scalar_select 0, %s6, %s4
  $region1: #{tpu_custom_call.1} parent=0
    #allocation2 [shape = 'u8[98304]{0}', space=vmem, size = 0x18000, scoped, tag = 'input window, operand 1, single buffered']
    #allocation3 [shape = 's32[1]{0}', space=sflag, size = 0x4, scoped, tag = 'scoped memory for tpu_custom_call.1']
    %8 = vsyncpa [#allocation3], 0
    // Predicated region
    $region2: #{tpu_custom_call.1} parent=1 // pred_check
      _
    $region3: #{tpu_custom_call.1} parent=1 // pred_check_branch
      %10 = sbr.rel (0) target = $region5
    $region4: #{tpu_custom_call.1} parent=1 // pred_region
      _
    $region5: #{tpu_custom_call.1} parent=1 // pred_fallthru
      _
    // Predicated region
    $region6: #{tpu_custom_call.1} parent=1 // pred_check
      _
    $region7: #{tpu_custom_call.1} parent=1 // pred_check_branch
      %12 = sbr.rel (0) target = $region9
    $region8: #{tpu_custom_call.1} parent=1 // pred_region
      %s14 = ssub.s32 3072, 3072
      %15 = vsyncadd [#allocation3], %s14
      %s16 = sshll.u32 [#allocation2], 4
      %s17 = int_to_ptr.vmem [resolvable:$true] %s16
      %22 = dma.hbm_to_vmem [thread:$0]  %s1, 3072, %s17, [#allocation3], 64, 64, 4
    $region9: #{tpu_custom_call.1} parent=1 // pred_fallthru
      _
    // Predicated region
    $region10: #{tpu_custom_call.1} parent=1 // pred_check
      _
    $region11: #{tpu_custom_call.1} parent=1 // pred_check_branch
      %24 = sbr.rel (0) target = $region13
    $region12: #{tpu_custom_call.1} parent=1 // pred_region
      _
    $region13: #{tpu_custom_call.1} parent=1 // pred_fallthru
      _
    // Predicated region
    $region14: #{tpu_custom_call.1} parent=1 // pred_check
      _
    $region15: #{tpu_custom_call.1} parent=1 // pred_check_branch
      %26 = sbr.rel (0) target = $region17
    $region16: #{tpu_custom_call.1} parent=1 // pred_region
      %27 = dma.done [#allocation3], 3072
    $region17: #{tpu_custom_call.1} parent=1 // pred_fallthru
      _
    %v29 = vld [vmem:[%s0] sm:$0xf]
    %v30 = vld [vmem:[%s0 + $0x4] sm:$0xf]
    %v31 = vld [vmem:[%s0 + $0x8] sm:$0xf]
    %v32 = vld [vmem:[%s0 + $0xc] sm:$0xf]
    %v33 = vld [vmem:[%s0 + $0x10] sm:$0xf]
    %v34 = vld [vmem:[%s0 + $0x14] sm:$0xf]
    %v35 = vld [vmem:[%s0 + $0x18] sm:$0xf]
    %v36 = vld [vmem:[%s0 + $0x1c] sm:$0xf]
    %v37 = vld [vmem:[%s0 + $0x20] sm:$0xf]
    %v38 = vld [vmem:[%s0 + $0x24] sm:$0xf]
    %v39 = vld [vmem:[%s0 + $0x28] sm:$0xf]
    %v40 = vld [vmem:[%s0 + $0x2c] sm:$0xf]
    %v41 = vld [vmem:[%s0 + $0x30] sm:$0xf]
    %v42 = vld [vmem:[%s0 + $0x34] sm:$0xf]
    %v43 = vld [vmem:[%s0 + $0x38] sm:$0xf]
    %v44 = vld [vmem:[%s0 + $0x3c] sm:$0xf]
    %v45 = vld [vmem:[%s0 + $0x40] sm:$0xf]
    %v46 = vld [vmem:[%s0 + $0x44] sm:$0xf]
    %v47 = vld [vmem:[%s0 + $0x48] sm:$0xf]
    %v48 = vld [vmem:[%s0 + $0x4c] sm:$0xf]
    %v49 = vld [vmem:[%s0 + $0x50] sm:$0xf]
    %v50 = vld [vmem:[%s0 + $0x54] sm:$0xf]
    %v51 = vld [vmem:[%s0 + $0x58] sm:$0xf]
    %v52 = vld [vmem:[%s0 + $0x5c] sm:$0xf]
    %v53 = vld [vmem:[%s0 + $0x60] sm:$0xf]
    %v54 = vld [vmem:[%s0 + $0x64] sm:$0xf]
    %v55 = vld [vmem:[%s0 + $0x68] sm:$0xf]
    %v56 = vld [vmem:[%s0 + $0x6c] sm:$0xf]
    %v57 = vld [vmem:[%s0 + $0x70] sm:$0xf]
    %v58 = vld [vmem:[%s0 + $0x74] sm:$0xf]
    %v59 = vld [vmem:[%s0 + $0x78] sm:$0xf]
    %v60 = vld [vmem:[%s0 + $0x7c] sm:$0xf]
    %v61 = vld [vmem:[#allocation2] sm:$0xf]
    %v62 = vld [vmem:[#allocation2 + $0x4] sm:$0xf]
    %v63 = vld [vmem:[%s2] sm:$0x1]
    %v65 = vlaneseq
    %v66 = vshrl.u32 %v65, 7
    %v67 = vsub.s32 0, %v66
    %v68 = vrot.slane %v63, %v67
    %v102 = vunpack.c.l.b16 %v29
    %v103 = vunpack.c.l.b16 %v30
    %v104 = vunpack.c.l.b16 %v31
    %v105 = vunpack.c.l.b16 %v32
    %v106 = vunpack.c.l.b16 %v33
    %v107 = vunpack.c.l.b16 %v34
    %v108 = vunpack.c.l.b16 %v35
    %v109 = vunpack.c.l.b16 %v36
    %v110 = vunpack.c.l.b16 %v37
    %v111 = vunpack.c.l.b16 %v38
    %v112 = vunpack.c.l.b16 %v39
    %v113 = vunpack.c.l.b16 %v40
    %v114 = vunpack.c.l.b16 %v41
    %v115 = vunpack.c.l.b16 %v42
    %v116 = vunpack.c.l.b16 %v43
    %v117 = vunpack.c.l.b16 %v44
    %v118 = vunpack.c.l.b16 %v45
    %v119 = vunpack.c.l.b16 %v46
    %v120 = vunpack.c.l.b16 %v47
    %v121 = vunpack.c.l.b16 %v48
    %v122 = vunpack.c.l.b16 %v49
    %v123 = vunpack.c.l.b16 %v50
    %v124 = vunpack.c.l.b16 %v51
    %v125 = vunpack.c.l.b16 %v52
    %v126 = vunpack.c.l.b16 %v53
    %v127 = vunpack.c.l.b16 %v54
    %v128 = vunpack.c.l.b16 %v55
    %v129 = vunpack.c.l.b16 %v56
    %v130 = vunpack.c.l.b16 %v57
    %v131 = vunpack.c.l.b16 %v58
    %v132 = vunpack.c.l.b16 %v59
    %v133 = vunpack.c.l.b16 %v60
    %v134 = vpack.c.b16 %v103, %v102
    %v135 = vpack.c.b16 %v105, %v104
    %v136 = vpack.c.b16 %v107, %v106
    %v137 = vpack.c.b16 %v109, %v108
    %v138 = vpack.c.b16 %v111, %v110
    %v139 = vpack.c.b16 %v113, %v112
    %v140 = vpack.c.b16 %v115, %v114
    %v141 = vpack.c.b16 %v117, %v116
    %v142 = vpack.c.b16 %v119, %v118
    %v143 = vpack.c.b16 %v121, %v120
    %v144 = vpack.c.b16 %v123, %v122
    %v145 = vpack.c.b16 %v125, %v124
    %v146 = vpack.c.b16 %v127, %v126
    %v147 = vpack.c.b16 %v129, %v128
    %v148 = vpack.c.b16 %v131, %v130
    %v149 = vpack.c.b16 %v133, %v132
    %v152 = vunpack.c.l.b16 %v61
    %v153 = vunpack.c.l.b16 %v62
    %v154 = vpack.c.b16 %v153, %v152
    %vm156 = vcmask 130048
    %v158 = vsel %vm156, %v134, 0
    %v161 = vsel %vm156, %v135, 0
    %v164 = vsel %vm156, %v136, 0
    %v167 = vsel %vm156, %v137, 0
    %v170 = vsel %vm156, %v138, 0
    %v173 = vsel %vm156, %v139, 0
    %v176 = vsel %vm156, %v140, 0
    %v179 = vsel %vm156, %v141, 0
    %v182 = vsel %vm156, %v142, 0
    %v185 = vsel %vm156, %v143, 0
    %v188 = vsel %vm156, %v144, 0
    %v191 = vsel %vm156, %v145, 0
    %v194 = vsel %vm156, %v146, 0
    %v197 = vsel %vm156, %v147, 0
    %v200 = vsel %vm156, %v148, 0
    %v203 = vsel %vm156, %v149, 0
    %205 = vmatprep.subr.bf16.mxu0 0
    %206 = vmatpush1.bf16.msra.mxu0 0
    %207 = vmatprep.subr.bf16.mxu0 0
    %208 = vmatpush1.bf16.msra.mxu0 0
    %209 = vmatprep.subr.bf16.mxu0 0
    %210 = vmatpush1.bf16.msra.mxu0 0
    %211 = vmatprep.subr.bf16.mxu0 0
    %212 = vmatpush1.bf16.msra.mxu0 0
    %213 = vmatprep.subr.bf16.mxu0 0
    %214 = vmatpush1.bf16.msra.mxu0 0
    %215 = vmatprep.subr.bf16.mxu0 0
    %216 = vmatpush1.bf16.msra.mxu0 0
    %217 = vmatprep.subr.bf16.mxu0 0
    %218 = vmatpush1.bf16.msra.mxu0 0
    %219 = vmatprep.subr.bf16.mxu0 0
    %220 = vmatpush1.bf16.msra.mxu0 %v154
    %221 = vmatprep.subr.bf16.mxu0 0
    %222 = vmatpush2.bf16.msra.mxu0 0
    %223 = vmatprep.subr.bf16.mxu0 0
    %224 = vmatpush2.bf16.msra.mxu0 0
    %225 = vmatprep.subr.bf16.mxu0 0
    %226 = vmatpush2.bf16.msra.mxu0 0
    %227 = vmatprep.subr.bf16.mxu0 0
    %228 = vmatpush2.bf16.msra.mxu0 0
    %229 = vmatprep.subr.bf16.mxu0 0
    %230 = vmatpush2.bf16.msra.mxu0 0
    %231 = vmatprep.subr.bf16.mxu0 0
    %232 = vmatpush2.bf16.msra.mxu0 0
    %233 = vmatprep.subr.bf16.mxu0 0
    %234 = vmatpush2.bf16.msra.mxu0 0
    %235 = vmatprep.subr.bf16.mxu0 0
    %236 = vmatpush2.bf16.msra.mxu0 0
    %237 = vmatprep.mubr.bf16.mxu0 0
    %238 = vmatmul.mubr.bf16.gmra.mxu0 %v158
    %v239 = vpop.f32.mrf.mxu0
    %v240 = vadd.f32 %v68, %v239
    %v241 = vpop.f32.mrf.mxu0
    %v242 = vpop.f32.mrf.mxu0
    %v243 = vadd.f32 %v68, %v242
    %v244 = vpop.f32.mrf.mxu0
    %245 = vmatprep.mubr.bf16.mxu0 0
    %246 = vmatmul.mubr.bf16.gmra.mxu0 %v161
    %v247 = vpop.f32.mrf.mxu0
    %v248 = vadd.f32 %v68, %v247
    %v249 = vpop.f32.mrf.mxu0
    %v250 = vpop.f32.mrf.mxu0
    %v251 = vadd.f32 %v68, %v250
    %v252 = vpop.f32.mrf.mxu0
    %253 = vmatprep.mubr.bf16.mxu0 0
    %254 = vmatmul.mubr.bf16.gmra.mxu0 %v164
    %v255 = vpop.f32.mrf.mxu0
    %v256 = vadd.f32 %v68, %v255
    %v257 = vpop.f32.mrf.mxu0
    %v258 = vpop.f32.mrf.mxu0
    %v259 = vadd.f32 %v68, %v258
    %v260 = vpop.f32.mrf.mxu0
    %261 = vmatprep.mubr.bf16.mxu0 0
    %262 = vmatmul.mubr.bf16.gmra.mxu0 %v167
    %v263 = vpop.f32.mrf.mxu0
    %v264 = vadd.f32 %v68, %v263
    %v265 = vpop.f32.mrf.mxu0
    %v266 = vpop.f32.mrf.mxu0
    %v267 = vadd.f32 %v68, %v266
    %v268 = vpop.f32.mrf.mxu0
    %269 = vmatprep.mubr.bf16.mxu0 0
    %270 = vmatmul.mubr.bf16.gmra.mxu0 %v170
    %v271 = vpop.f32.mrf.mxu0
    %v272 = vadd.f32 %v68, %v271
    %v273 = vpop.f32.mrf.mxu0
    %v274 = vpop.f32.mrf.mxu0
    %v275 = vadd.f32 %v68, %v274
    %v276 = vpop.f32.mrf.mxu0
    %277 = vmatprep.mubr.bf16.mxu0 0
    %278 = vmatmul.mubr.bf16.gmra.mxu0 %v173
    %v279 = vpop.f32.mrf.mxu0
    %v280 = vadd.f32 %v68, %v279
    %v281 = vpop.f32.mrf.mxu0
    %v282 = vpop.f32.mrf.mxu0
    %v283 = vadd.f32 %v68, %v282
    %v284 = vpop.f32.mrf.mxu0
    %285 = vmatprep.mubr.bf16.mxu0 0
    %286 = vmatmul.mubr.bf16.gmra.mxu0 %v176
    %v287 = vpop.f32.mrf.mxu0
    %v288 = vadd.f32 %v68, %v287
    %v289 = vpop.f32.mrf.mxu0
    %v290 = vpop.f32.mrf.mxu0
    %v291 = vadd.f32 %v68, %v290
    %v292 = vpop.f32.mrf.mxu0
    %293 = vmatprep.mubr.bf16.mxu0 0
    %294 = vmatmul.mubr.bf16.gmra.mxu0 %v179
    %v295 = vpop.f32.mrf.mxu0
    %v296 = vadd.f32 %v68, %v295
    %v297 = vpop.f32.mrf.mxu0
    %v298 = vpop.f32.mrf.mxu0
    %v299 = vadd.f32 %v68, %v298
    %v300 = vpop.f32.mrf.mxu0
    %301 = vmatprep.mubr.bf16.mxu0 0
    %302 = vmatmul.mubr.bf16.gmra.mxu0 %v182
    %v303 = vpop.f32.mrf.mxu0
    %v304 = vadd.f32 %v68, %v303
    %v305 = vpop.f32.mrf.mxu0
    %v306 = vpop.f32.mrf.mxu0
    %v307 = vadd.f32 %v68, %v306
    %v308 = vpop.f32.mrf.mxu0
    %309 = vmatprep.mubr.bf16.mxu0 0
    %310 = vmatmul.mubr.bf16.gmra.mxu0 %v185
    %v311 = vpop.f32.mrf.mxu0
    %v312 = vadd.f32 %v68, %v311
    %v313 = vpop.f32.mrf.mxu0
    %v314 = vpop.f32.mrf.mxu0
    %v315 = vadd.f32 %v68, %v314
    %v316 = vpop.f32.mrf.mxu0
    %317 = vmatprep.mubr.bf16.mxu0 0
    %318 = vmatmul.mubr.bf16.gmra.mxu0 %v188
    %v319 = vpop.f32.mrf.mxu0
    %v320 = vadd.f32 %v68, %v319
    %v321 = vpop.f32.mrf.mxu0
    %v322 = vpop.f32.mrf.mxu0
    %v323 = vadd.f32 %v68, %v322
    %v324 = vpop.f32.mrf.mxu0
    %325 = vmatprep.mubr.bf16.mxu0 0
    %326 = vmatmul.mubr.bf16.gmra.mxu0 %v191
    %v327 = vpop.f32.mrf.mxu0
    %v328 = vadd.f32 %v68, %v327
    %v329 = vpop.f32.mrf.mxu0
    %v330 = vpop.f32.mrf.mxu0
    %v331 = vadd.f32 %v68, %v330
    %v332 = vpop.f32.mrf.mxu0
    %333 = vmatprep.mubr.bf16.mxu0 0
    %334 = vmatmul.mubr.bf16.gmra.mxu0 %v194
    %v335 = vpop.f32.mrf.mxu0
    %v336 = vadd.f32 %v68, %v335
    %v337 = vpop.f32.mrf.mxu0
    %v338 = vpop.f32.mrf.mxu0
    %v339 = vadd.f32 %v68, %v338
    %v340 = vpop.f32.mrf.mxu0
    %341 = vmatprep.mubr.bf16.mxu0 0
    %342 = vmatmul.mubr.bf16.gmra.mxu0 %v197
    %v343 = vpop.f32.mrf.mxu0
    %v344 = vadd.f32 %v68, %v343
    %v345 = vpop.f32.mrf.mxu0
    %v346 = vpop.f32.mrf.mxu0
    %v347 = vadd.f32 %v68, %v346
    %v348 = vpop.f32.mrf.mxu0
    %349 = vmatprep.mubr.bf16.mxu0 0
    %350 = vmatmul.mubr.bf16.gmra.mxu0 %v200
    %v351 = vpop.f32.mrf.mxu0
    %v352 = vadd.f32 %v68, %v351
    %v353 = vpop.f32.mrf.mxu0
    %v354 = vpop.f32.mrf.mxu0
    %v355 = vadd.f32 %v68, %v354
    %v356 = vpop.f32.mrf.mxu0
    %357 = vmatprep.mubr.bf16.mxu0 0
    %358 = vmatmul.mubr.bf16.gmra.mxu0 %v203
    %v359 = vpop.f32.mrf.mxu0
    %v360 = vadd.f32 %v68, %v359
    %v361 = vpop.f32.mrf.mxu0
    %v362 = vpop.f32.mrf.mxu0
    %v363 = vadd.f32 %v68, %v362
    %v364 = vpop.f32.mrf.mxu0
    %365 = vdwg.mxu0
    %v366 = vmax.f32 %v240, 0.0
    %v367 = vmax.f32 %v243, 0.0
    %v368 = vmax.f32 %v248, 0.0
    %v369 = vmax.f32 %v251, 0.0
    %v370 = vmax.f32 %v256, 0.0
    %v371 = vmax.f32 %v259, 0.0
    %v372 = vmax.f32 %v264, 0.0
    %v373 = vmax.f32 %v267, 0.0
    %v374 = vmax.f32 %v272, 0.0
    %v375 = vmax.f32 %v275, 0.0
    %v376 = vmax.f32 %v280, 0.0
    %v377 = vmax.f32 %v283, 0.0
    %v378 = vmax.f32 %v288, 0.0
    %v379 = vmax.f32 %v291, 0.0
    %v380 = vmax.f32 %v296, 0.0
    %v381 = vmax.f32 %v299, 0.0
    %v382 = vmax.f32 %v304, 0.0
    %v383 = vmax.f32 %v307, 0.0
    %v384 = vmax.f32 %v312, 0.0
    %v385 = vmax.f32 %v315, 0.0
    %v386 = vmax.f32 %v320, 0.0
    %v387 = vmax.f32 %v323, 0.0
    %v388 = vmax.f32 %v328, 0.0
    %v389 = vmax.f32 %v331, 0.0
    %v390 = vmax.f32 %v336, 0.0
    %v391 = vmax.f32 %v339, 0.0
    %v392 = vmax.f32 %v344, 0.0
    %v393 = vmax.f32 %v347, 0.0
    %v394 = vmax.f32 %v352, 0.0
    %v395 = vmax.f32 %v355, 0.0
    %v396 = vmax.f32 %v360, 0.0
    %v397 = vmax.f32 %v363, 0.0
    %v398 = vpack.c.bf16 %v367, %v366
    %v399 = vpack.c.bf16 %v369, %v368
    %v400 = vpack.c.bf16 %v371, %v370
    %v401 = vpack.c.bf16 %v373, %v372
    %v402 = vpack.c.bf16 %v375, %v374
    %v403 = vpack.c.bf16 %v377, %v376
    %v404 = vpack.c.bf16 %v379, %v378
    %v405 = vpack.c.bf16 %v381, %v380
    %v406 = vpack.c.bf16 %v383, %v382
    %v407 = vpack.c.bf16 %v385, %v384
    %v408 = vpack.c.bf16 %v387, %v386
    %v409 = vpack.c.bf16 %v389, %v388
    %v410 = vpack.c.bf16 %v391, %v390
    %v411 = vpack.c.bf16 %v393, %v392
    %v412 = vpack.c.bf16 %v395, %v394
    %v413 = vpack.c.bf16 %v397, %v396
    %s414 = scalar_lea.vmem [#allocation2], 64
    %v415 = vld [vmem:[%s414] sm:$0xf]
    %v416 = vld [vmem:[%s414 + $0x4] sm:$0xf]
    %v417 = vld [vmem:[%s414 + $0x8] sm:$0xf]
    %v418 = vld [vmem:[%s414 + $0xc] sm:$0xf]
    %v419 = vld [vmem:[%s414 + $0x10] sm:$0xf]
    %v420 = vld [vmem:[%s414 + $0x14] sm:$0xf]
    %v421 = vld [vmem:[%s414 + $0x18] sm:$0xf]
    %v422 = vld [vmem:[%s414 + $0x1c] sm:$0xf]
    %v423 = vld [vmem:[%s414 + $0x20] sm:$0xf]
    %v424 = vld [vmem:[%s414 + $0x24] sm:$0xf]
    %v425 = vld [vmem:[%s414 + $0x28] sm:$0xf]
    %v426 = vld [vmem:[%s414 + $0x2c] sm:$0xf]
    %v427 = vld [vmem:[%s414 + $0x30] sm:$0xf]
    %v428 = vld [vmem:[%s414 + $0x34] sm:$0xf]
    %v429 = vld [vmem:[%s414 + $0x38] sm:$0xf]
    %v430 = vld [vmem:[%s414 + $0x3c] sm:$0xf]
    %s431 = scalar_lea.vmem %s2, 1
    %v432 = vld [vmem:[%s431] sm:$0x1]
    %v434 = vlaneseq
    %v435 = vshrl.u32 %v434, 7
    %v436 = vsub.s32 0, %v435
    %v437 = vrot.slane %v432, %v436
    %v455 = vunpack.c.l.b16 %v415
    %v456 = vunpack.c.l.b16 %v416
    %v457 = vunpack.c.l.b16 %v417
    %v458 = vunpack.c.l.b16 %v418
    %v459 = vunpack.c.l.b16 %v419
    %v460 = vunpack.c.l.b16 %v420
    %v461 = vunpack.c.l.b16 %v421
    %v462 = vunpack.c.l.b16 %v422
    %v463 = vunpack.c.l.b16 %v423
    %v464 = vunpack.c.l.b16 %v424
    %v465 = vunpack.c.l.b16 %v425
    %v466 = vunpack.c.l.b16 %v426
    %v467 = vunpack.c.l.b16 %v427
    %v468 = vunpack.c.l.b16 %v428
    %v469 = vunpack.c.l.b16 %v429
    %v470 = vunpack.c.l.b16 %v430
    %v471 = vpack.c.b16 %v456, %v455
    %v472 = vpack.c.b16 %v458, %v457
    %v473 = vpack.c.b16 %v460, %v459
    %v474 = vpack.c.b16 %v462, %v461
    %v475 = vpack.c.b16 %v464, %v463
    %v476 = vpack.c.b16 %v466, %v465
    %v477 = vpack.c.b16 %v468, %v467
    %v478 = vpack.c.b16 %v470, %v469
    %487 = vmatprep.subr.bf16.mxu0 0
    %488 = vmatpush1.bf16.msra.mxu0 %v478
    %489 = vmatprep.subr.bf16.mxu0 0
    %490 = vmatpush1.bf16.msra.mxu0 %v477
    %491 = vmatprep.subr.bf16.mxu0 0
    %492 = vmatpush1.bf16.msra.mxu0 %v476
    %493 = vmatprep.subr.bf16.mxu0 0
    %494 = vmatpush1.bf16.msra.mxu0 %v475
    %495 = vmatprep.subr.bf16.mxu0 0
    %496 = vmatpush1.bf16.msra.mxu0 %v474
    %497 = vmatprep.subr.bf16.mxu0 0
    %498 = vmatpush1.bf16.msra.mxu0 %v473
    %499 = vmatprep.subr.bf16.mxu0 0
    %500 = vmatpush1.bf16.msra.mxu0 %v472
    %501 = vmatprep.subr.bf16.mxu0 0
    %502 = vmatpush1.bf16.msra.mxu0 %v471
    %503 = vmatprep.subr.bf16.mxu0 0
    %504 = vmatpush2.bf16.msra.mxu0 0
    %505 = vmatprep.subr.bf16.mxu0 0
    %506 = vmatpush2.bf16.msra.mxu0 0
    %507 = vmatprep.subr.bf16.mxu0 0
    %508 = vmatpush2.bf16.msra.mxu0 0
    %509 = vmatprep.subr.bf16.mxu0 0
    %510 = vmatpush2.bf16.msra.mxu0 0
    %511 = vmatprep.subr.bf16.mxu0 0
    %512 = vmatpush2.bf16.msra.mxu0 0
    %513 = vmatprep.subr.bf16.mxu0 0
    %514 = vmatpush2.bf16.msra.mxu0 0
    %515 = vmatprep.subr.bf16.mxu0 0
    %516 = vmatpush2.bf16.msra.mxu0 0
    %517 = vmatprep.subr.bf16.mxu0 0
    %518 = vmatpush2.bf16.msra.mxu0 0
    %519 = vmatprep.mubr.bf16.mxu0 0
    %520 = vmatmul.mubr.bf16.gmra.mxu0 %v398
    %v521 = vpop.f32.mrf.mxu0
    %v522 = vadd.f32 %v437, %v521
    %v523 = vpop.f32.mrf.mxu0
    %v524 = vpop.f32.mrf.mxu0
    %v525 = vadd.f32 %v437, %v524
    %v526 = vpop.f32.mrf.mxu0
    %527 = vmatprep.mubr.bf16.mxu0 0
    %528 = vmatmul.mubr.bf16.gmra.mxu0 %v399
    %v529 = vpop.f32.mrf.mxu0
    %v530 = vadd.f32 %v437, %v529
    %v531 = vpop.f32.mrf.mxu0
    %v532 = vpop.f32.mrf.mxu0
    %v533 = vadd.f32 %v437, %v532
    %v534 = vpop.f32.mrf.mxu0
    %535 = vmatprep.mubr.bf16.mxu0 0
    %536 = vmatmul.mubr.bf16.gmra.mxu0 %v400
    %v537 = vpop.f32.mrf.mxu0
    %v538 = vadd.f32 %v437, %v537
    %v539 = vpop.f32.mrf.mxu0
    %v540 = vpop.f32.mrf.mxu0
    %v541 = vadd.f32 %v437, %v540
    %v542 = vpop.f32.mrf.mxu0
    %543 = vmatprep.mubr.bf16.mxu0 0
    %544 = vmatmul.mubr.bf16.gmra.mxu0 %v401
    %v545 = vpop.f32.mrf.mxu0
    %v546 = vadd.f32 %v437, %v545
    %v547 = vpop.f32.mrf.mxu0
    %v548 = vpop.f32.mrf.mxu0
    %v549 = vadd.f32 %v437, %v548
    %v550 = vpop.f32.mrf.mxu0
    %551 = vmatprep.mubr.bf16.mxu0 0
    %552 = vmatmul.mubr.bf16.gmra.mxu0 %v402
    %v553 = vpop.f32.mrf.mxu0
    %v554 = vadd.f32 %v437, %v553
    %v555 = vpop.f32.mrf.mxu0
    %v556 = vpop.f32.mrf.mxu0
    %v557 = vadd.f32 %v437, %v556
    %v558 = vpop.f32.mrf.mxu0
    %559 = vmatprep.mubr.bf16.mxu0 0
    %560 = vmatmul.mubr.bf16.gmra.mxu0 %v403
    %v561 = vpop.f32.mrf.mxu0
    %v562 = vadd.f32 %v437, %v561
    %v563 = vpop.f32.mrf.mxu0
    %v564 = vpop.f32.mrf.mxu0
    %v565 = vadd.f32 %v437, %v564
    %v566 = vpop.f32.mrf.mxu0
    %567 = vmatprep.mubr.bf16.mxu0 0
    %568 = vmatmul.mubr.bf16.gmra.mxu0 %v404
    %v569 = vpop.f32.mrf.mxu0
    %v570 = vadd.f32 %v437, %v569
    %v571 = vpop.f32.mrf.mxu0
    %v572 = vpop.f32.mrf.mxu0
    %v573 = vadd.f32 %v437, %v572
    %v574 = vpop.f32.mrf.mxu0
    %575 = vmatprep.mubr.bf16.mxu0 0
    %576 = vmatmul.mubr.bf16.gmra.mxu0 %v405
    %v577 = vpop.f32.mrf.mxu0
    %v578 = vadd.f32 %v437, %v577
    %v579 = vpop.f32.mrf.mxu0
    %v580 = vpop.f32.mrf.mxu0
    %v581 = vadd.f32 %v437, %v580
    %v582 = vpop.f32.mrf.mxu0
    %583 = vmatprep.mubr.bf16.mxu0 0
    %584 = vmatmul.mubr.bf16.gmra.mxu0 %v406
    %v585 = vpop.f32.mrf.mxu0
    %v586 = vadd.f32 %v437, %v585
    %v587 = vpop.f32.mrf.mxu0
    %v588 = vpop.f32.mrf.mxu0
    %v589 = vadd.f32 %v437, %v588
    %v590 = vpop.f32.mrf.mxu0
    %591 = vmatprep.mubr.bf16.mxu0 0
    %592 = vmatmul.mubr.bf16.gmra.mxu0 %v407
    %v593 = vpop.f32.mrf.mxu0
    %v594 = vadd.f32 %v437, %v593
    %v595 = vpop.f32.mrf.mxu0
    %v596 = vpop.f32.mrf.mxu0
    %v597 = vadd.f32 %v437, %v596
    %v598 = vpop.f32.mrf.mxu0
    %599 = vmatprep.mubr.bf16.mxu0 0
    %600 = vmatmul.mubr.bf16.gmra.mxu0 %v408
    %v601 = vpop.f32.mrf.mxu0
    %v602 = vadd.f32 %v437, %v601
    %v603 = vpop.f32.mrf.mxu0
    %v604 = vpop.f32.mrf.mxu0
    %v605 = vadd.f32 %v437, %v604
    %v606 = vpop.f32.mrf.mxu0
    %607 = vmatprep.mubr.bf16.mxu0 0
    %608 = vmatmul.mubr.bf16.gmra.mxu0 %v409
    %v609 = vpop.f32.mrf.mxu0
    %v610 = vadd.f32 %v437, %v609
    %v611 = vpop.f32.mrf.mxu0
    %v612 = vpop.f32.mrf.mxu0
    %v613 = vadd.f32 %v437, %v612
    %v614 = vpop.f32.mrf.mxu0
    %615 = vmatprep.mubr.bf16.mxu0 0
    %616 = vmatmul.mubr.bf16.gmra.mxu0 %v410
    %v617 = vpop.f32.mrf.mxu0
    %v618 = vadd.f32 %v437, %v617
    %v619 = vpop.f32.mrf.mxu0
    %v620 = vpop.f32.mrf.mxu0
    %v621 = vadd.f32 %v437, %v620
    %v622 = vpop.f32.mrf.mxu0
    %623 = vmatprep.mubr.bf16.mxu0 0
    %624 = vmatmul.mubr.bf16.gmra.mxu0 %v411
    %v625 = vpop.f32.mrf.mxu0
    %v626 = vadd.f32 %v437, %v625
    %v627 = vpop.f32.mrf.mxu0
    %v628 = vpop.f32.mrf.mxu0
    %v629 = vadd.f32 %v437, %v628
    %v630 = vpop.f32.mrf.mxu0
    %631 = vmatprep.mubr.bf16.mxu0 0
    %632 = vmatmul.mubr.bf16.gmra.mxu0 %v412
    %v633 = vpop.f32.mrf.mxu0
    %v634 = vadd.f32 %v437, %v633
    %v635 = vpop.f32.mrf.mxu0
    %v636 = vpop.f32.mrf.mxu0
    %v637 = vadd.f32 %v437, %v636
    %v638 = vpop.f32.mrf.mxu0
    %639 = vmatprep.mubr.bf16.mxu0 0
    %640 = vmatmul.mubr.bf16.gmra.mxu0 %v413
    %v641 = vpop.f32.mrf.mxu0
    %v642 = vadd.f32 %v437, %v641
    %v643 = vpop.f32.mrf.mxu0
    %v644 = vpop.f32.mrf.mxu0
    %v645 = vadd.f32 %v437, %v644
    %v646 = vpop.f32.mrf.mxu0
    %647 = vdwg.mxu0
    %v648 = vmax.f32 %v522, 0.0
    %v649 = vmax.f32 %v525, 0.0
    %v650 = vmax.f32 %v530, 0.0
    %v651 = vmax.f32 %v533, 0.0
    %v652 = vmax.f32 %v538, 0.0
    %v653 = vmax.f32 %v541, 0.0
    %v654 = vmax.f32 %v546, 0.0
    %v655 = vmax.f32 %v549, 0.0
    %v656 = vmax.f32 %v554, 0.0
    %v657 = vmax.f32 %v557, 0.0
    %v658 = vmax.f32 %v562, 0.0
    %v659 = vmax.f32 %v565, 0.0
    %v660 = vmax.f32 %v570, 0.0
    %v661 = vmax.f32 %v573, 0.0
    %v662 = vmax.f32 %v578, 0.0
    %v663 = vmax.f32 %v581, 0.0
    %v664 = vmax.f32 %v586, 0.0
    %v665 = vmax.f32 %v589, 0.0
    %v666 = vmax.f32 %v594, 0.0
    %v667 = vmax.f32 %v597, 0.0
    %v668 = vmax.f32 %v602, 0.0
    %v669 = vmax.f32 %v605, 0.0
    %v670 = vmax.f32 %v610, 0.0
    %v671 = vmax.f32 %v613, 0.0
    %v672 = vmax.f32 %v618, 0.0
    %v673 = vmax.f32 %v621, 0.0
    %v674 = vmax.f32 %v626, 0.0
    %v675 = vmax.f32 %v629, 0.0
    %v676 = vmax.f32 %v634, 0.0
    %v677 = vmax.f32 %v637, 0.0
    %v678 = vmax.f32 %v642, 0.0
    %v679 = vmax.f32 %v645, 0.0
    %v680 = vpack.c.bf16 %v649, %v648
    %v681 = vpack.c.bf16 %v651, %v650
    %v682 = vpack.c.bf16 %v653, %v652
    %v683 = vpack.c.bf16 %v655, %v654
    %v684 = vpack.c.bf16 %v657, %v656
    %v685 = vpack.c.bf16 %v659, %v658
    %v686 = vpack.c.bf16 %v661, %v660
    %v687 = vpack.c.bf16 %v663, %v662
    %v688 = vpack.c.bf16 %v665, %v664
    %v689 = vpack.c.bf16 %v667, %v666
    %v690 = vpack.c.bf16 %v669, %v668
    %v691 = vpack.c.bf16 %v671, %v670
    %v692 = vpack.c.bf16 %v673, %v672
    %v693 = vpack.c.bf16 %v675, %v674
    %v694 = vpack.c.bf16 %v677, %v676
    %v695 = vpack.c.bf16 %v679, %v678
    %s696 = scalar_lea.vmem [#allocation2], 128
    %v697 = vld [vmem:[%s696] sm:$0xf]
    %v698 = vld [vmem:[%s696 + $0x4] sm:$0xf]
    %v699 = vld [vmem:[%s696 + $0x8] sm:$0xf]
    %v700 = vld [vmem:[%s696 + $0xc] sm:$0xf]
    %v701 = vld [vmem:[%s696 + $0x10] sm:$0xf]
    %v702 = vld [vmem:[%s696 + $0x14] sm:$0xf]
    %v703 = vld [vmem:[%s696 + $0x18] sm:$0xf]
    %v704 = vld [vmem:[%s696 + $0x1c] sm:$0xf]
    %v705 = vld [vmem:[%s696 + $0x20] sm:$0xf]
    %v706 = vld [vmem:[%s696 + $0x24] sm:$0xf]
    %v707 = vld [vmem:[%s696 + $0x28] sm:$0xf]
    %v708 = vld [vmem:[%s696 + $0x2c] sm:$0xf]
    %v709 = vld [vmem:[%s696 + $0x30] sm:$0xf]
    %v710 = vld [vmem:[%s696 + $0x34] sm:$0xf]
    %v711 = vld [vmem:[%s696 + $0x38] sm:$0xf]
    %v712 = vld [vmem:[%s696 + $0x3c] sm:$0xf]
    %s713 = scalar_lea.vmem %s2, 2
    %v714 = vld [vmem:[%s713] sm:$0x1]
    %v716 = vlaneseq
    %v717 = vshrl.u32 %v716, 7
    %v718 = vsub.s32 0, %v717
    %v719 = vrot.slane %v714, %v718
    %v737 = vunpack.c.l.b16 %v697
    %v738 = vunpack.c.l.b16 %v698
    %v739 = vunpack.c.l.b16 %v699
    %v740 = vunpack.c.l.b16 %v700
    %v741 = vunpack.c.l.b16 %v701
    %v742 = vunpack.c.l.b16 %v702
    %v743 = vunpack.c.l.b16 %v703
    %v744 = vunpack.c.l.b16 %v704
    %v745 = vunpack.c.l.b16 %v705
    %v746 = vunpack.c.l.b16 %v706
    %v747 = vunpack.c.l.b16 %v707
    %v748 = vunpack.c.l.b16 %v708
    %v749 = vunpack.c.l.b16 %v709
    %v750 = vunpack.c.l.b16 %v710
    %v751 = vunpack.c.l.b16 %v711
    %v752 = vunpack.c.l.b16 %v712
    %v753 = vpack.c.b16 %v738, %v737
    %v754 = vpack.c.b16 %v740, %v739
    %v755 = vpack.c.b16 %v742, %v741
    %v756 = vpack.c.b16 %v744, %v743
    %v757 = vpack.c.b16 %v746, %v745
    %v758 = vpack.c.b16 %v748, %v747
    %v759 = vpack.c.b16 %v750, %v749
    %v760 = vpack.c.b16 %v752, %v751
    %769 = vmatprep.subr.bf16.mxu0 0
    %770 = vmatpush1.bf16.msra.mxu0 %v760
    %771 = vmatprep.subr.bf16.mxu0 0
    %772 = vmatpush1.bf16.msra.mxu0 %v759
    %773 = vmatprep.subr.bf16.mxu0 0
    %774 = vmatpush1.bf16.msra.mxu0 %v758
    %775 = vmatprep.subr.bf16.mxu0 0
    %776 = vmatpush1.bf16.msra.mxu0 %v757
    %777 = vmatprep.subr.bf16.mxu0 0
    %778 = vmatpush1.bf16.msra.mxu0 %v756
    %779 = vmatprep.subr.bf16.mxu0 0
    %780 = vmatpush1.bf16.msra.mxu0 %v755
    %781 = vmatprep.subr.bf16.mxu0 0
    %782 = vmatpush1.bf16.msra.mxu0 %v754
    %783 = vmatprep.subr.bf16.mxu0 0
    %784 = vmatpush1.bf16.msra.mxu0 %v753
    %785 = vmatprep.subr.bf16.mxu0 0
    %786 = vmatpush2.bf16.msra.mxu0 0
    %787 = vmatprep.subr.bf16.mxu0 0
    %788 = vmatpush2.bf16.msra.mxu0 0
    %789 = vmatprep.subr.bf16.mxu0 0
    %790 = vmatpush2.bf16.msra.mxu0 0
    %791 = vmatprep.subr.bf16.mxu0 0
    %792 = vmatpush2.bf16.msra.mxu0 0
    %793 = vmatprep.subr.bf16.mxu0 0
    %794 = vmatpush2.bf16.msra.mxu0 0
    %795 = vmatprep.subr.bf16.mxu0 0
    %796 = vmatpush2.bf16.msra.mxu0 0
    %797 = vmatprep.subr.bf16.mxu0 0
    %798 = vmatpush2.bf16.msra.mxu0 0
    %799 = vmatprep.subr.bf16.mxu0 0
    %800 = vmatpush2.bf16.msra.mxu0 0
    %801 = vmatprep.mubr.bf16.mxu0 0
    %802 = vmatmul.mubr.bf16.gmra.mxu0 %v680
    %v803 = vpop.f32.mrf.mxu0
    %v804 = vadd.f32 %v719, %v803
    %v805 = vpop.f32.mrf.mxu0
    %v806 = vpop.f32.mrf.mxu0
    %v807 = vadd.f32 %v719, %v806
    %v808 = vpop.f32.mrf.mxu0
    %809 = vmatprep.mubr.bf16.mxu0 0
    %810 = vmatmul.mubr.bf16.gmra.mxu0 %v681
    %v811 = vpop.f32.mrf.mxu0
    %v812 = vadd.f32 %v719, %v811
    %v813 = vpop.f32.mrf.mxu0
    %v814 = vpop.f32.mrf.mxu0
    %v815 = vadd.f32 %v719, %v814
    %v816 = vpop.f32.mrf.mxu0
    %817 = vmatprep.mubr.bf16.mxu0 0
    %818 = vmatmul.mubr.bf16.gmra.mxu0 %v682
    %v819 = vpop.f32.mrf.mxu0
    %v820 = vadd.f32 %v719, %v819
    %v821 = vpop.f32.mrf.mxu0
    %v822 = vpop.f32.mrf.mxu0
    %v823 = vadd.f32 %v719, %v822
    %v824 = vpop.f32.mrf.mxu0
    %825 = vmatprep.mubr.bf16.mxu0 0
    %826 = vmatmul.mubr.bf16.gmra.mxu0 %v683
    %v827 = vpop.f32.mrf.mxu0
    %v828 = vadd.f32 %v719, %v827
    %v829 = vpop.f32.mrf.mxu0
    %v830 = vpop.f32.mrf.mxu0
    %v831 = vadd.f32 %v719, %v830
    %v832 = vpop.f32.mrf.mxu0
    %833 = vmatprep.mubr.bf16.mxu0 0
    %834 = vmatmul.mubr.bf16.gmra.mxu0 %v684
    %v835 = vpop.f32.mrf.mxu0
    %v836 = vadd.f32 %v719, %v835
    %v837 = vpop.f32.mrf.mxu0
    %v838 = vpop.f32.mrf.mxu0
    %v839 = vadd.f32 %v719, %v838
    %v840 = vpop.f32.mrf.mxu0
    %841 = vmatprep.mubr.bf16.mxu0 0
    %842 = vmatmul.mubr.bf16.gmra.mxu0 %v685
    %v843 = vpop.f32.mrf.mxu0
    %v844 = vadd.f32 %v719, %v843
    %v845 = vpop.f32.mrf.mxu0
    %v846 = vpop.f32.mrf.mxu0
    %v847 = vadd.f32 %v719, %v846
    %v848 = vpop.f32.mrf.mxu0
    %849 = vmatprep.mubr.bf16.mxu0 0
    %850 = vmatmul.mubr.bf16.gmra.mxu0 %v686
    %v851 = vpop.f32.mrf.mxu0
    %v852 = vadd.f32 %v719, %v851
    %v853 = vpop.f32.mrf.mxu0
    %v854 = vpop.f32.mrf.mxu0
    %v855 = vadd.f32 %v719, %v854
    %v856 = vpop.f32.mrf.mxu0
    %857 = vmatprep.mubr.bf16.mxu0 0
    %858 = vmatmul.mubr.bf16.gmra.mxu0 %v687
    %v859 = vpop.f32.mrf.mxu0
    %v860 = vadd.f32 %v719, %v859
    %v861 = vpop.f32.mrf.mxu0
    %v862 = vpop.f32.mrf.mxu0
    %v863 = vadd.f32 %v719, %v862
    %v864 = vpop.f32.mrf.mxu0
    %865 = vmatprep.mubr.bf16.mxu0 0
    %866 = vmatmul.mubr.bf16.gmra.mxu0 %v688
    %v867 = vpop.f32.mrf.mxu0
    %v868 = vadd.f32 %v719, %v867
    %v869 = vpop.f32.mrf.mxu0
    %v870 = vpop.f32.mrf.mxu0
    %v871 = vadd.f32 %v719, %v870
    %v872 = vpop.f32.mrf.mxu0
    %873 = vmatprep.mubr.bf16.mxu0 0
    %874 = vmatmul.mubr.bf16.gmra.mxu0 %v689
    %v875 = vpop.f32.mrf.mxu0
    %v876 = vadd.f32 %v719, %v875
    %v877 = vpop.f32.mrf.mxu0
    %v878 = vpop.f32.mrf.mxu0
    %v879 = vadd.f32 %v719, %v878
    %v880 = vpop.f32.mrf.mxu0
    %881 = vmatprep.mubr.bf16.mxu0 0
    %882 = vmatmul.mubr.bf16.gmra.mxu0 %v690
    %v883 = vpop.f32.mrf.mxu0
    %v884 = vadd.f32 %v719, %v883
    %v885 = vpop.f32.mrf.mxu0
    %v886 = vpop.f32.mrf.mxu0
    %v887 = vadd.f32 %v719, %v886
    %v888 = vpop.f32.mrf.mxu0
    %889 = vmatprep.mubr.bf16.mxu0 0
    %890 = vmatmul.mubr.bf16.gmra.mxu0 %v691
    %v891 = vpop.f32.mrf.mxu0
    %v892 = vadd.f32 %v719, %v891
    %v893 = vpop.f32.mrf.mxu0
    %v894 = vpop.f32.mrf.mxu0
    %v895 = vadd.f32 %v719, %v894
    %v896 = vpop.f32.mrf.mxu0
    %897 = vmatprep.mubr.bf16.mxu0 0
    %898 = vmatmul.mubr.bf16.gmra.mxu0 %v692
    %v899 = vpop.f32.mrf.mxu0
    %v900 = vadd.f32 %v719, %v899
    %v901 = vpop.f32.mrf.mxu0
    %v902 = vpop.f32.mrf.mxu0
    %v903 = vadd.f32 %v719, %v902
    %v904 = vpop.f32.mrf.mxu0
    %905 = vmatprep.mubr.bf16.mxu0 0
    %906 = vmatmul.mubr.bf16.gmra.mxu0 %v693
    %v907 = vpop.f32.mrf.mxu0
    %v908 = vadd.f32 %v719, %v907
    %v909 = vpop.f32.mrf.mxu0
    %v910 = vpop.f32.mrf.mxu0
    %v911 = vadd.f32 %v719, %v910
    %v912 = vpop.f32.mrf.mxu0
    %913 = vmatprep.mubr.bf16.mxu0 0
    %914 = vmatmul.mubr.bf16.gmra.mxu0 %v694
    %v915 = vpop.f32.mrf.mxu0
    %v916 = vadd.f32 %v719, %v915
    %v917 = vpop.f32.mrf.mxu0
    %v918 = vpop.f32.mrf.mxu0
    %v919 = vadd.f32 %v719, %v918
    %v920 = vpop.f32.mrf.mxu0
    %921 = vmatprep.mubr.bf16.mxu0 0
    %922 = vmatmul.mubr.bf16.gmra.mxu0 %v695
    %v923 = vpop.f32.mrf.mxu0
    %v924 = vadd.f32 %v719, %v923
    %v925 = vpop.f32.mrf.mxu0
    %v926 = vpop.f32.mrf.mxu0
    %v927 = vadd.f32 %v719, %v926
    %v928 = vpop.f32.mrf.mxu0
    %929 = vdwg.mxu0
    %v930 = vtanh.pop %v804
    %v931 = vtanh.pop %v807
    %v932 = vtanh.pop %v812
    %v933 = vtanh.pop %v815
    %v934 = vtanh.pop %v820
    %v935 = vtanh.pop %v823
    %v936 = vtanh.pop %v828
    %v937 = vtanh.pop %v831
    %v938 = vtanh.pop %v836
    %v939 = vtanh.pop %v839
    %v940 = vtanh.pop %v844
    %v941 = vtanh.pop %v847
    %v942 = vtanh.pop %v852
    %v943 = vtanh.pop %v855
    %v944 = vtanh.pop %v860
    %v945 = vtanh.pop %v863
    %v946 = vtanh.pop %v868
    %v947 = vtanh.pop %v871
    %v948 = vtanh.pop %v876
    %v949 = vtanh.pop %v879
    %v950 = vtanh.pop %v884
    %v951 = vtanh.pop %v887
    %v952 = vtanh.pop %v892
    %v953 = vtanh.pop %v895
    %v954 = vtanh.pop %v900
    %v955 = vtanh.pop %v903
    %v956 = vtanh.pop %v908
    %v957 = vtanh.pop %v911
    %v958 = vtanh.pop %v916
    %v959 = vtanh.pop %v919
    %v960 = vtanh.pop %v924
    %v961 = vtanh.pop %v927
    %v962 = vmul.f32 %v930, 2.0
    %v963 = vmul.f32 %v931, 2.0
    %v964 = vmul.f32 %v932, 2.0
    %v965 = vmul.f32 %v933, 2.0
    %v966 = vmul.f32 %v934, 2.0
    %v967 = vmul.f32 %v935, 2.0
    %v968 = vmul.f32 %v936, 2.0
    %v969 = vmul.f32 %v937, 2.0
    %v970 = vmul.f32 %v938, 2.0
    %v971 = vmul.f32 %v939, 2.0
    %v972 = vmul.f32 %v940, 2.0
    %v973 = vmul.f32 %v941, 2.0
    %v974 = vmul.f32 %v942, 2.0
    %v975 = vmul.f32 %v943, 2.0
    %v976 = vmul.f32 %v944, 2.0
    %v977 = vmul.f32 %v945, 2.0
    %v978 = vmul.f32 %v946, 2.0
    %v979 = vmul.f32 %v947, 2.0
    %v980 = vmul.f32 %v948, 2.0
    %v981 = vmul.f32 %v949, 2.0
    %v982 = vmul.f32 %v950, 2.0
    %v983 = vmul.f32 %v951, 2.0
    %v984 = vmul.f32 %v952, 2.0
    %v985 = vmul.f32 %v953, 2.0
    %v986 = vmul.f32 %v954, 2.0
    %v987 = vmul.f32 %v955, 2.0
    %v988 = vmul.f32 %v956, 2.0
    %v989 = vmul.f32 %v957, 2.0
    %v990 = vmul.f32 %v958, 2.0
    %v991 = vmul.f32 %v959, 2.0
    %v992 = vmul.f32 %v960, 2.0
    %v993 = vmul.f32 %v961, 2.0
    %vm994 = vcmask 64512
    %995 = vst.msk [vmem:[%s3] sm:$0xff] %vm994, %v962
    %996 = vst.msk [vmem:[%s3 + $0x8] sm:$0xff] %vm994, %v963
    %997 = vst.msk [vmem:[%s3 + $0x10] sm:$0xff] %vm994, %v964
    %998 = vst.msk [vmem:[%s3 + $0x18] sm:$0xff] %vm994, %v965
    %999 = vst.msk [vmem:[%s3 + $0x20] sm:$0xff] %vm994, %v966
    %1000 = vst.msk [vmem:[%s3 + $0x28] sm:$0xff] %vm994, %v967
    %1001 = vst.msk [vmem:[%s3 + $0x30] sm:$0xff] %vm994, %v968
    %1002 = vst.msk [vmem:[%s3 + $0x38] sm:$0xff] %vm994, %v969
    %1003 = vst.msk [vmem:[%s3 + $0x40] sm:$0xff] %vm994, %v970
    %1004 = vst.msk [vmem:[%s3 + $0x48] sm:$0xff] %vm994, %v971
    %1005 = vst.msk [vmem:[%s3 + $0x50] sm:$0xff] %vm994, %v972
    %1006 = vst.msk [vmem:[%s3 + $0x58] sm:$0xff] %vm994, %v973
    %1007 = vst.msk [vmem:[%s3 + $0x60] sm:$0xff] %vm994, %v974
    %1008 = vst.msk [vmem:[%s3 + $0x68] sm:$0xff] %vm994, %v975
    %1009 = vst.msk [vmem:[%s3 + $0x70] sm:$0xff] %vm994, %v976
    %1010 = vst.msk [vmem:[%s3 + $0x78] sm:$0xff] %vm994, %v977
    %1011 = vst.msk [vmem:[%s3 + $0x80] sm:$0xff] %vm994, %v978
    %1012 = vst.msk [vmem:[%s3 + $0x88] sm:$0xff] %vm994, %v979
    %1013 = vst.msk [vmem:[%s3 + $0x90] sm:$0xff] %vm994, %v980
    %1014 = vst.msk [vmem:[%s3 + $0x98] sm:$0xff] %vm994, %v981
    %1015 = vst.msk [vmem:[%s3 + $0xa0] sm:$0xff] %vm994, %v982
    %1016 = vst.msk [vmem:[%s3 + $0xa8] sm:$0xff] %vm994, %v983
    %1017 = vst.msk [vmem:[%s3 + $0xb0] sm:$0xff] %vm994, %v984
    %1018 = vst.msk [vmem:[%s3 + $0xb8] sm:$0xff] %vm994, %v985
    %1019 = vst.msk [vmem:[%s3 + $0xc0] sm:$0xff] %vm994, %v986
    %1020 = vst.msk [vmem:[%s3 + $0xc8] sm:$0xff] %vm994, %v987
    %1021 = vst.msk [vmem:[%s3 + $0xd0] sm:$0xff] %vm994, %v988
    %1022 = vst.msk [vmem:[%s3 + $0xd8] sm:$0xff] %vm994, %v989
    %1023 = vst.msk [vmem:[%s3 + $0xe0] sm:$0xff] %vm994, %v990
    %1024 = vst.msk [vmem:[%s3 + $0xe8] sm:$0xff] %vm994, %v991
    %1025 = vst.msk [vmem:[%s3 + $0xf0] sm:$0xff] %vm994, %v992
    %1026 = vst.msk [vmem:[%s3 + $0xf8] sm:$0xff] %vm994, %v993
    // Predicated region
    $region18: #{tpu_custom_call.1} parent=1 // pred_check
      _
    $region19: #{tpu_custom_call.1} parent=1 // pred_check_branch
      %1028 = sbr.rel (0) target = $region21
    $region20: #{tpu_custom_call.1} parent=1 // pred_region
      _
    $region21: #{tpu_custom_call.1} parent=1 // pred_fallthru
      _
    // Predicated region
    $region22: #{tpu_custom_call.1} parent=1 // pred_check
      _
    $region23: #{tpu_custom_call.1} parent=1 // pred_check_branch
      %1030 = sbr.rel (0) target = $region25
    $region24: #{tpu_custom_call.1} parent=1 // pred_region
      _
    $region25: #{tpu_custom_call.1} parent=1 // pred_fallthru
      _
    %1031 = vsyncpa [#allocation3], 1

</llo_original>
